<compile_context>
chip_gen: v5e
topology: v5e:2x2
jax: 0.10.0
libtpu: 0.0.40
codegen_flags: <defaults>
</compile_context>

<pallas_src>
import functools

import jax
import jax.numpy as jnp
from jax.experimental import pallas as pl
from jax.experimental.pallas import tpu as pltpu


def _collision_kernel(pos_ref, post_ref, cnt_ref, loss_ref, *, rad, bt):
    """Processes `bt` batch elements; writes lane-dense (8, N) partial sums."""
    n = pos_ref.shape[1]
    dims = pos_ref.shape[2]
    thresh = jnp.float32(2.0 * rad)
    thresh2 = thresh * thresh

    row = jax.lax.broadcasted_iota(jnp.int32, (n, n), 0)
    col = jax.lax.broadcasted_iota(jnp.int32, (n, n), 1)
    upper = col > row                              # each unordered pair exactly once

    if n % 8 == 0:
        def fold(a):                               # (N, N) -> (8, N): vreg-wise VPU adds only
            return jnp.sum(a.reshape(n // 8, 8, n), axis=0)
    else:
        def fold(a):                               # static fallback path (not hit for N % 8 == 0)
            s = jnp.sum(a, axis=0, keepdims=True)
            return jnp.concatenate([s, jnp.zeros((7, n), jnp.float32)], axis=0)

    def body(i, carry):
        cnt_acc, loss_acc = carry
        x = pos_ref[i].astype(jnp.float32)         # (N, D)
        xt = post_ref[i].astype(jnp.float32)       # (D, N) lane-dense per-dim rows

        # Direct per-dimension differences: exact, VPU-only (no MXU / cancellation).
        d2 = jnp.zeros((n, n), jnp.float32)
        for d in range(dims):
            diff = x[:, d:d + 1] - xt[d:d + 1, :]  # (N, 1) - (1, N) -> (N, N)
            d2 = d2 + diff * diff

        collide = jnp.logical_and(upper, d2 < thresh2)   # mask from d2, not sqrt
        dist = jnp.sqrt(d2)                              # sqrt (EUP) only feeds the penalty
        pen = jnp.where(collide, thresh - dist, 0.0)

        cnt_acc = cnt_acc + fold(collide.astype(jnp.float32))
        loss_acc = loss_acc + fold(pen * pen)
        return cnt_acc, loss_acc

    init = (jnp.zeros((8, n), jnp.float32), jnp.zeros((8, n), jnp.float32))
    cnt_acc, loss_acc = jax.lax.fori_loop(0, bt, body, init, unroll=True)

    cnt_ref[0] = cnt_acc
    loss_ref[0] = loss_acc


def _pick_block_batch(B, N):
    """Largest divisor of B (<= 8) such that live (N,N) f32 temps stay well inside VMEM."""
    per_batch_bytes = 6 * N * N * 4                # ~6 live NxN f32 temps per fused batch elem
    cap = max(1, min(8, (8 * 1024 * 1024) // max(per_batch_bytes, 1)))
    bt = 1
    for c in range(1, min(cap, B) + 1):
        if B % c == 0:
            bt = c
    return bt


def robot_collision_forward(pos, rad, sort_dim=0):
    """Pallas implementation of RobotCollision(rad, sortDim)(pos) -> (count, loss)."""
    del sort_dim  # sort is only an acceleration structure; result is sort-independent
    B, N, D = pos.shape
    bt = _pick_block_batch(B, N)
    steps = B // bt
    pos_t = jnp.swapaxes(pos, 1, 2)                # (B, D, N): lane-dense per-dimension rows

    kernel = functools.partial(_collision_kernel, rad=float(rad), bt=bt)
    cnt_part, loss_part = pl.pallas_call(
        kernel,
        out_shape=(jax.ShapeDtypeStruct((steps, 8, N), jnp.float32),
                   jax.ShapeDtypeStruct((steps, 8, N), jnp.float32)),
        grid_spec=pltpu.PrefetchScalarGridSpec(
            num_scalar_prefetch=0,
            grid=(steps,),
            in_specs=[pl.BlockSpec((bt, N, D), lambda s: (s, 0, 0)),
                      pl.BlockSpec((bt, D, N), lambda s: (s, 0, 0))],
            out_specs=[pl.BlockSpec((1, 8, N), lambda s: (s, 0, 0)),
                       pl.BlockSpec((1, 8, N), lambda s: (s, 0, 0))],
        ),
        compiler_params=pltpu.CompilerParams(
            dimension_semantics=("parallel",)),
    )(pos, pos_t)

    # Final tiny cross-lane/sublane/step reduction done in plain JAX.
    count = jnp.sum(cnt_part).astype(jnp.int32)
    loss = jnp.sum(loss_part)
    return count, loss


def _reference_forward(pos, rad):
    pos = pos.astype(jnp.float32)
    diff = pos[:, :, None, :] - pos[:, None, :, :]
    dist = jnp.sqrt(jnp.sum(diff * diff, axis=-1))
    n = pos.shape[1]
    upper = jnp.triu(jnp.ones((n, n), dtype=bool), k=1)[None]
    collide = upper & (dist < 2.0 * rad)
    count = jnp.sum(collide.astype(jnp.int32))
    pen = jnp.where(collide, 2.0 * rad - dist, 0.0)
    return count, jnp.sum(pen * pen)


if __name__ == "__main__":
    key = jax.random.PRNGKey(0)
    B, N, D = 2, 128, 3          # batch of configs, robots per config, spatial dims
    rad = 0.08                    # collision radius (module __init__ arg)
    sort_dim = 0                  # module __init__ arg (acceleration only)

    pos = jax.random.uniform(key, (B, N, D), dtype=jnp.float32)

    count, loss = robot_collision_forward(pos, rad, sort_dim)
    jax.block_until_ready((count, loss))

    ref_count, ref_loss = _reference_forward(pos, rad)
    assert int(count) == int(ref_count), (int(count), int(ref_count))
    assert abs(float(loss) - float(ref_loss)) <= 1e-5 * max(1.0, abs(float(ref_loss)))

    print("KERNEL_OK")
</pallas_src>

<mosaic_0001>
module attributes {stable_mosaic.version = 11 : i64} {
  func.func @_collision_kernel(%arg0: i32, %arg1: memref<2x128x3xf32, #tpu.memory_space<vmem>>, %arg2: memref<2x3x128xf32, #tpu.memory_space<vmem>>, %arg3: memref<1x8x128xf32, #tpu.memory_space<vmem>>, %arg4: memref<1x8x128xf32, #tpu.memory_space<vmem>>) attributes {dimension_semantics = [#tpu.dimension_semantics<parallel>], iteration_bounds = array<i64: 1>, scalar_prefetch = 0 : i64, scratch_operands = 0 : i64, tpu.core_type = #tpu.core_type<tc>, window_params = [{transform_indices = @transform_0, window_bounds = array<i64: 2, 128, 3>}, {transform_indices = @transform_1, window_bounds = array<i64: 2, 3, 128>}, {transform_indices = @transform_2, window_bounds = array<i64: 1, 8, 128>}, {transform_indices = @transform_3, window_bounds = array<i64: 1, 8, 128>}]} {
    %cst = arith.constant 1.600000e-01 : f32
    %cst_0 = arith.constant 1.600000e-01 : f32
    %0 = arith.mulf %cst, %cst_0 : f32
    %1 = tpu.iota {dimensions = array<i32: 0>} : vector<128x128xi32>
    %2 = tpu.iota {dimensions = array<i32: 1>} : vector<128x128xi32>
    %3 = arith.cmpi sgt, %2, %1 : vector<128x128xi32>
    %cst_1 = arith.constant 0.000000e+00 : f32
    %4 = vector.broadcast %cst_1 : f32 to vector<8x128xf32>
    %cst_2 = arith.constant 0.000000e+00 : f32
    %5 = vector.broadcast %cst_2 : f32 to vector<8x128xf32>
    %cst_3 = arith.constant 1.600000e-01 : f32
    %c0_i32 = arith.constant 0 : i32
    %6 = arith.index_cast %c0_i32 : i32 to index
    %c0 = arith.constant 0 : index
    %c0_4 = arith.constant 0 : index
    %7 = vector.load %arg1[%6, %c0, %c0_4] : memref<2x128x3xf32, #tpu.memory_space<vmem>>, vector<1x128x3xf32>
    %8 = vector.shape_cast %7 : vector<1x128x3xf32> to vector<128x3xf32>
    %9 = arith.index_cast %c0_i32 : i32 to index
    %c0_5 = arith.constant 0 : index
    %c0_6 = arith.constant 0 : index
    %10 = vector.load %arg2[%9, %c0_5, %c0_6] : memref<2x3x128xf32, #tpu.memory_space<vmem>>, vector<1x3x128xf32>
    %11 = vector.shape_cast %10 : vector<1x3x128xf32> to vector<3x128xf32>
    %cst_7 = arith.constant 0.000000e+00 : f32
    %12 = vector.broadcast %cst_7 : f32 to vector<128x128xf32>
    %13 = vector.extract_strided_slice %8 {offsets = [0, 0], sizes = [128, 1], strides = [1, 1]} : vector<128x3xf32> to vector<128x1xf32>
    %14 = vector.extract_strided_slice %11 {offsets = [0, 0], sizes = [1, 128], strides = [1, 1]} : vector<3x128xf32> to vector<1x128xf32>
    %15 = vector.broadcast %13 : vector<128x1xf32> to vector<128x128xf32>
    %16 = vector.broadcast %14 : vector<1x128xf32> to vector<128x128xf32>
    %17 = arith.subf %15, %16 : vector<128x128xf32>
    %18 = arith.mulf %17, %17 : vector<128x128xf32>
    %19 = arith.addf %12, %18 : vector<128x128xf32>
    %20 = vector.extract_strided_slice %8 {offsets = [0, 1], sizes = [128, 1], strides = [1, 1]} : vector<128x3xf32> to vector<128x1xf32>
    %21 = vector.extract_strided_slice %11 {offsets = [1, 0], sizes = [1, 128], strides = [1, 1]} : vector<3x128xf32> to vector<1x128xf32>
    %22 = vector.broadcast %20 : vector<128x1xf32> to vector<128x128xf32>
    %23 = vector.broadcast %21 : vector<1x128xf32> to vector<128x128xf32>
    %24 = arith.subf %22, %23 : vector<128x128xf32>
    %25 = arith.mulf %24, %24 : vector<128x128xf32>
    %26 = arith.addf %19, %25 : vector<128x128xf32>
    %27 = vector.extract_strided_slice %8 {offsets = [0, 2], sizes = [128, 1], strides = [1, 1]} : vector<128x3xf32> to vector<128x1xf32>
    %28 = vector.extract_strided_slice %11 {offsets = [2, 0], sizes = [1, 128], strides = [1, 1]} : vector<3x128xf32> to vector<1x128xf32>
    %29 = vector.broadcast %27 : vector<128x1xf32> to vector<128x128xf32>
    %30 = vector.broadcast %28 : vector<1x128xf32> to vector<128x128xf32>
    %31 = arith.subf %29, %30 : vector<128x128xf32>
    %32 = arith.mulf %31, %31 : vector<128x128xf32>
    %33 = arith.addf %26, %32 : vector<128x128xf32>
    %34 = vector.broadcast %0 : f32 to vector<128x128xf32>
    %35 = arith.cmpf olt, %33, %34 : vector<128x128xf32>
    %36 = arith.andi %3, %35 : vector<128x128xi1>
    %37 = math.sqrt %33 : vector<128x128xf32>
    %38 = vector.broadcast %cst_3 : f32 to vector<128x128xf32>
    %39 = arith.subf %38, %37 : vector<128x128xf32>
    %cst_8 = arith.constant 0.000000e+00 : f32
    %40 = vector.broadcast %cst_8 : f32 to vector<128x128xf32>
    %41 = arith.select %36, %39, %40 : vector<128x128xi1>, vector<128x128xf32>
    %42 = arith.extui %36 : vector<128x128xi1> to vector<128x128xi32>
    %43 = arith.sitofp %42 : vector<128x128xi32> to vector<128x128xf32>
    %44 = vector.shape_cast %43 : vector<128x128xf32> to vector<16x8x128xf32>
    %cst_9 = arith.constant dense<0.000000e+00> : vector<8x128xf32>
    %45 = vector.multi_reduction <add>, %44, %cst_9 [0] : vector<16x8x128xf32> to vector<8x128xf32>
    %46 = arith.addf %4, %45 : vector<8x128xf32>
    %47 = arith.mulf %41, %41 : vector<128x128xf32>
    %48 = vector.shape_cast %47 : vector<128x128xf32> to vector<16x8x128xf32>
    %cst_10 = arith.constant dense<0.000000e+00> : vector<8x128xf32>
    %49 = vector.multi_reduction <add>, %48, %cst_10 [0] : vector<16x8x128xf32> to vector<8x128xf32>
    %50 = arith.addf %5, %49 : vector<8x128xf32>
    %c1_i32 = arith.constant 1 : i32
    %51 = arith.index_cast %c1_i32 : i32 to index
    %c0_11 = arith.constant 0 : index
    %c0_12 = arith.constant 0 : index
    %52 = vector.load %arg1[%51, %c0_11, %c0_12] : memref<2x128x3xf32, #tpu.memory_space<vmem>>, vector<1x128x3xf32>
    %53 = vector.shape_cast %52 : vector<1x128x3xf32> to vector<128x3xf32>
    %54 = arith.index_cast %c1_i32 : i32 to index
    %c0_13 = arith.constant 0 : index
    %c0_14 = arith.constant 0 : index
    %55 = vector.load %arg2[%54, %c0_13, %c0_14] : memref<2x3x128xf32, #tpu.memory_space<vmem>>, vector<1x3x128xf32>
    %56 = vector.shape_cast %55 : vector<1x3x128xf32> to vector<3x128xf32>
    %cst_15 = arith.constant 0.000000e+00 : f32
    %57 = vector.broadcast %cst_15 : f32 to vector<128x128xf32>
    %58 = vector.extract_strided_slice %53 {offsets = [0, 0], sizes = [128, 1], strides = [1, 1]} : vector<128x3xf32> to vector<128x1xf32>
    %59 = vector.extract_strided_slice %56 {offsets = [0, 0], sizes = [1, 128], strides = [1, 1]} : vector<3x128xf32> to vector<1x128xf32>
    %60 = vector.broadcast %58 : vector<128x1xf32> to vector<128x128xf32>
    %61 = vector.broadcast %59 : vector<1x128xf32> to vector<128x128xf32>
    %62 = arith.subf %60, %61 : vector<128x128xf32>
    %63 = arith.mulf %62, %62 : vector<128x128xf32>
    %64 = arith.addf %57, %63 : vector<128x128xf32>
    %65 = vector.extract_strided_slice %53 {offsets = [0, 1], sizes = [128, 1], strides = [1, 1]} : vector<128x3xf32> to vector<128x1xf32>
    %66 = vector.extract_strided_slice %56 {offsets = [1, 0], sizes = [1, 128], strides = [1, 1]} : vector<3x128xf32> to vector<1x128xf32>
    %67 = vector.broadcast %65 : vector<128x1xf32> to vector<128x128xf32>
    %68 = vector.broadcast %66 : vector<1x128xf32> to vector<128x128xf32>
    %69 = arith.subf %67, %68 : vector<128x128xf32>
    %70 = arith.mulf %69, %69 : vector<128x128xf32>
    %71 = arith.addf %64, %70 : vector<128x128xf32>
    %72 = vector.extract_strided_slice %53 {offsets = [0, 2], sizes = [128, 1], strides = [1, 1]} : vector<128x3xf32> to vector<128x1xf32>
    %73 = vector.extract_strided_slice %56 {offsets = [2, 0], sizes = [1, 128], strides = [1, 1]} : vector<3x128xf32> to vector<1x128xf32>
    %74 = vector.broadcast %72 : vector<128x1xf32> to vector<128x128xf32>
    %75 = vector.broadcast %73 : vector<1x128xf32> to vector<128x128xf32>
    %76 = arith.subf %74, %75 : vector<128x128xf32>
    %77 = arith.mulf %76, %76 : vector<128x128xf32>
    %78 = arith.addf %71, %77 : vector<128x128xf32>
    %79 = vector.broadcast %0 : f32 to vector<128x128xf32>
    %80 = arith.cmpf olt, %78, %79 : vector<128x128xf32>
    %81 = arith.andi %3, %80 : vector<128x128xi1>
    %82 = math.sqrt %78 : vector<128x128xf32>
    %83 = vector.broadcast %cst_3 : f32 to vector<128x128xf32>
    %84 = arith.subf %83, %82 : vector<128x128xf32>
    %cst_16 = arith.constant 0.000000e+00 : f32
    %85 = vector.broadcast %cst_16 : f32 to vector<128x128xf32>
    %86 = arith.select %81, %84, %85 : vector<128x128xi1>, vector<128x128xf32>
    %87 = arith.extui %81 : vector<128x128xi1> to vector<128x128xi32>
    %88 = arith.sitofp %87 : vector<128x128xi32> to vector<128x128xf32>
    %89 = vector.shape_cast %88 : vector<128x128xf32> to vector<16x8x128xf32>
    %cst_17 = arith.constant dense<0.000000e+00> : vector<8x128xf32>
    %90 = vector.multi_reduction <add>, %89, %cst_17 [0] : vector<16x8x128xf32> to vector<8x128xf32>
    %91 = arith.addf %46, %90 : vector<8x128xf32>
    %92 = arith.mulf %86, %86 : vector<128x128xf32>
    %93 = vector.shape_cast %92 : vector<128x128xf32> to vector<16x8x128xf32>
    %cst_18 = arith.constant dense<0.000000e+00> : vector<8x128xf32>
    %94 = vector.multi_reduction <add>, %93, %cst_18 [0] : vector<16x8x128xf32> to vector<8x128xf32>
    %95 = arith.addf %50, %94 : vector<8x128xf32>
    %c2_i32 = arith.constant 2 : i32
    %c0_19 = arith.constant 0 : index
    %c0_20 = arith.constant 0 : index
    %c0_21 = arith.constant 0 : index
    %96 = vector.load %arg3[%c0_19, %c0_20, %c0_21] : memref<1x8x128xf32, #tpu.memory_space<vmem>>, vector<1x8x128xf32>
    %97 = vector.shape_cast %96 : vector<1x8x128xf32> to vector<8x128xf32>
    %98 = vector.shape_cast %91 : vector<8x128xf32> to vector<1x8x128xf32>
    tpu.vector_store %arg3[%c0_19, %c0_20, %c0_21], %98 {strides = array<i32>} : memref<1x8x128xf32, #tpu.memory_space<vmem>>, vector<1x8x128xf32>,
    %c0_22 = arith.constant 0 : index
    %c0_23 = arith.constant 0 : index
    %c0_24 = arith.constant 0 : index
    %99 = vector.load %arg4[%c0_22, %c0_23, %c0_24] : memref<1x8x128xf32, #tpu.memory_space<vmem>>, vector<1x8x128xf32>
    %100 = vector.shape_cast %99 : vector<1x8x128xf32> to vector<8x128xf32>
    %101 = vector.shape_cast %95 : vector<8x128xf32> to vector<1x8x128xf32>
    tpu.vector_store %arg4[%c0_22, %c0_23, %c0_24], %101 {strides = array<i32>} : memref<1x8x128xf32, #tpu.memory_space<vmem>>, vector<1x8x128xf32>,
    return
  }
  func.func @transform_0(%arg0: i32) -> (i32, i32, i32) {
    %c0_i32 = arith.constant 0 : i32
    %c0_i32_0 = arith.constant 0 : i32
    %c0_i32_1 = arith.constant 0 : i32
    return %arg0, %c0_i32, %c0_i32_0 : i32, i32, i32
  }
  func.func @transform_1(%arg0: i32) -> (i32, i32, i32) {
    %c0_i32 = arith.constant 0 : i32
    %c0_i32_0 = arith.constant 0 : i32
    %c0_i32_1 = arith.constant 0 : i32
    return %arg0, %c0_i32, %c0_i32_0 : i32, i32, i32
  }
  func.func @transform_2(%arg0: i32) -> (i32, i32, i32) {
    %c0_i32 = arith.constant 0 : i32
    %c0_i32_0 = arith.constant 0 : i32
    %c0_i32_1 = arith.constant 0 : i32
    return %arg0, %c0_i32, %c0_i32_0 : i32, i32, i32
  }
  func.func @transform_3(%arg0: i32) -> (i32, i32, i32) {
    %c0_i32 = arith.constant 0 : i32
    %c0_i32_0 = arith.constant 0 : i32
    %c0_i32_1 = arith.constant 0 : i32
    return %arg0, %c0_i32, %c0_i32_0 : i32, i32, i32
  }
}

</mosaic_0001>

<llo_original>
// kernel: tpu_custom_call.1
$region0: #{tpu_custom_call.1}
  #allocation0 [shape = 'u32[]', space=smem, size = 0x4, offset = 0x4, fixed_abs, tag = 'smem constant byte address 0x4 - core index']
  #allocation1 [shape = 'u32[72,128]{1,0:T(1,128)}', space=vmem, size = 0x9000, scoped, tag = 'internal scratch']
  %s0 = inlined_call_operand.vmem [shape: f32[2,128,3], index: 0, kind: input, shape index: {}]
  %s1 = inlined_call_operand.vmem [shape: f32[2,3,128], index: 1, kind: input, shape index: {}]
  %s2 = inlined_call_operand.hbm [shape: f32[1,8,128], index: 2, kind: output, shape index: {0}]
  %s3 = inlined_call_operand.hbm [shape: f32[1,8,128], index: 3, kind: output, shape index: {1}]
  %4 = xla_tuple %s2, %s3
  %s5 = sld [smem:[#allocation0]]
  $region26: #{tpu_custom_call.1} parent=0
    _
  %s7 = ssub.s32 1, %s5
  %s8 = scalar_select 0, %s7, %s5
  $region1: #{tpu_custom_call.1} parent=0
    #allocation2 [shape = 'u8[4096]{0}', space=vmem, size = 0x1000, scoped, tag = 'output window, operand 0, single buffered']
    #allocation3 [shape = 's32[1]{0}', space=sflag, size = 0x4, scoped, tag = 'scoped memory for tpu_custom_call.1']
    #allocation4 [shape = 'u8[4096]{0}', space=vmem, size = 0x1000, scoped, tag = 'output window, operand 1, single buffered']
    #allocation5 [shape = 's32[1]{0}', space=sflag, size = 0x4, scoped, tag = 'scoped memory for tpu_custom_call.1']
    %9 = vsyncpa [#allocation3], 0
    %10 = vsyncpa [#allocation5], 0
    // Predicated region
    $region2: #{tpu_custom_call.1} parent=1 // pred_check
      _
    $region3: #{tpu_custom_call.1} parent=1 // pred_check_branch
      %12 = sbr.rel (0) target = $region5
    $region4: #{tpu_custom_call.1} parent=1 // pred_region
      _
    $region5: #{tpu_custom_call.1} parent=1 // pred_fallthru
      _
    // Predicated region
    $region6: #{tpu_custom_call.1} parent=1 // pred_check
      _
    $region7: #{tpu_custom_call.1} parent=1 // pred_check_branch
      %14 = sbr.rel (0) target = $region9
    $region8: #{tpu_custom_call.1} parent=1 // pred_region
      _
    $region9: #{tpu_custom_call.1} parent=1 // pred_fallthru
      _
    %v15 = vlaneseq
    %v16 = vshrl.u32 %v15, 7
    %v17 = vadd.s32 %v16, 8
    %v18 = vadd.s32 %v16, 16
    %v19 = vadd.s32 %v16, 24
    %v20 = vadd.s32 %v16, 32
    %v21 = vadd.s32 %v16, 40
    %v22 = vadd.s32 %v16, 48
    %v23 = vadd.s32 %v16, 56
    %v24 = vadd.s32 %v16, 64
    %v25 = vadd.s32 %v16, 72
    %v26 = vadd.s32 %v16, 80
    %v27 = vadd.s32 %v16, 88
    %v28 = vadd.s32 %v16, 96
    %v29 = vadd.s32 %v16, 104
    %v30 = vadd.s32 %v16, 112
    %v31 = vadd.s32 %v16, 120
    %v32 = vlaneseq
    %v33 = vand.u32 %v32, 127
    %vm34 = vcmp.gt.s32.totalorder %v33, %v16
    %vm35 = vcmp.gt.s32.totalorder %v33, %v17
    %vm36 = vcmp.gt.s32.totalorder %v33, %v18
    %vm37 = vcmp.gt.s32.totalorder %v33, %v19
    %vm38 = vcmp.gt.s32.totalorder %v33, %v20
    %vm39 = vcmp.gt.s32.totalorder %v33, %v21
    %vm40 = vcmp.gt.s32.totalorder %v33, %v22
    %vm41 = vcmp.gt.s32.totalorder %v33, %v23
    %vm42 = vcmp.gt.s32.totalorder %v33, %v24
    %vm43 = vcmp.gt.s32.totalorder %v33, %v25
    %vm44 = vcmp.gt.s32.totalorder %v33, %v26
    %vm45 = vcmp.gt.s32.totalorder %v33, %v27
    %vm46 = vcmp.gt.s32.totalorder %v33, %v28
    %vm47 = vcmp.gt.s32.totalorder %v33, %v29
    %vm48 = vcmp.gt.s32.totalorder %v33, %v30
    %vm49 = vcmp.gt.s32.totalorder %v33, %v31
    %v50 = vld [vmem:[%s0] sm:$0xff]
    %v51 = vld [vmem:[%s0 + $0x8] sm:$0xff]
    %v52 = vld [vmem:[%s0 + $0x10] sm:$0xff]
    %v53 = vld [vmem:[%s0 + $0x18] sm:$0xff]
    %v54 = vld [vmem:[%s0 + $0x20] sm:$0xff]
    %v55 = vld [vmem:[%s0 + $0x28] sm:$0xff]
    %v56 = vld [vmem:[%s0 + $0x30] sm:$0xff]
    %v57 = vld [vmem:[%s0 + $0x38] sm:$0xff]
    %v58 = vld [vmem:[%s0 + $0x40] sm:$0xff]
    %v59 = vld [vmem:[%s0 + $0x48] sm:$0xff]
    %v60 = vld [vmem:[%s0 + $0x50] sm:$0xff]
    %v61 = vld [vmem:[%s0 + $0x58] sm:$0xff]
    %v62 = vld [vmem:[%s0 + $0x60] sm:$0xff]
    %v63 = vld [vmem:[%s0 + $0x68] sm:$0xff]
    %v64 = vld [vmem:[%s0 + $0x70] sm:$0xff]
    %v65 = vld [vmem:[%s0 + $0x78] sm:$0xff]
    %v66 = vld [vmem:[%s1] sm:$0x7]
    %68 = vset.pattern.permute.xlu0 0
    %69 = vperm.xlu0 %68, %v50
    %v70 = vpop.permute.xlu0 %69
    %73 = vset.pattern.permute.xlu0 0
    %74 = vperm.xlu0 %73, %v51
    %v75 = vpop.permute.xlu0 %74
    %78 = vset.pattern.permute.xlu0 0
    %79 = vperm.xlu0 %78, %v52
    %v80 = vpop.permute.xlu0 %79
    %83 = vset.pattern.permute.xlu0 0
    %84 = vperm.xlu0 %83, %v53
    %v85 = vpop.permute.xlu0 %84
    %88 = vset.pattern.permute.xlu0 0
    %89 = vperm.xlu0 %88, %v54
    %v90 = vpop.permute.xlu0 %89
    %93 = vset.pattern.permute.xlu0 0
    %94 = vperm.xlu0 %93, %v55
    %v95 = vpop.permute.xlu0 %94
    %98 = vset.pattern.permute.xlu0 0
    %99 = vperm.xlu0 %98, %v56
    %v100 = vpop.permute.xlu0 %99
    %103 = vset.pattern.permute.xlu0 0
    %104 = vperm.xlu0 %103, %v57
    %v105 = vpop.permute.xlu0 %104
    %108 = vset.pattern.permute.xlu0 0
    %109 = vperm.xlu0 %108, %v58
    %v110 = vpop.permute.xlu0 %109
    %113 = vset.pattern.permute.xlu0 0
    %114 = vperm.xlu0 %113, %v59
    %v115 = vpop.permute.xlu0 %114
    %118 = vset.pattern.permute.xlu0 0
    %119 = vperm.xlu0 %118, %v60
    %v120 = vpop.permute.xlu0 %119
    %123 = vset.pattern.permute.xlu0 0
    %124 = vperm.xlu0 %123, %v61
    %v125 = vpop.permute.xlu0 %124
    %128 = vset.pattern.permute.xlu0 0
    %129 = vperm.xlu0 %128, %v62
    %v130 = vpop.permute.xlu0 %129
    %133 = vset.pattern.permute.xlu0 0
    %134 = vperm.xlu0 %133, %v63
    %v135 = vpop.permute.xlu0 %134
    %138 = vset.pattern.permute.xlu0 0
    %139 = vperm.xlu0 %138, %v64
    %v140 = vpop.permute.xlu0 %139
    %143 = vset.pattern.permute.xlu0 0
    %144 = vperm.xlu0 %143, %v65
    %v145 = vpop.permute.xlu0 %144
    %v147 = vperm.slane %v66, 0
    %v148 = vsub.f32 %v70, %v147
    %v149 = vsub.f32 %v75, %v147
    %v150 = vsub.f32 %v80, %v147
    %v151 = vsub.f32 %v85, %v147
    %v152 = vsub.f32 %v90, %v147
    %v153 = vsub.f32 %v95, %v147
    %v154 = vsub.f32 %v100, %v147
    %v155 = vsub.f32 %v105, %v147
    %v156 = vsub.f32 %v110, %v147
    %v157 = vsub.f32 %v115, %v147
    %v158 = vsub.f32 %v120, %v147
    %v159 = vsub.f32 %v125, %v147
    %v160 = vsub.f32 %v130, %v147
    %v161 = vsub.f32 %v135, %v147
    %v162 = vsub.f32 %v140, %v147
    %v163 = vsub.f32 %v145, %v147
    %v164 = vmul.f32 %v148, %v148
    %v165 = vmul.f32 %v149, %v149
    %v166 = vmul.f32 %v150, %v150
    %v167 = vmul.f32 %v151, %v151
    %v168 = vmul.f32 %v152, %v152
    %v169 = vmul.f32 %v153, %v153
    %v170 = vmul.f32 %v154, %v154
    %v171 = vmul.f32 %v155, %v155
    %v172 = vmul.f32 %v156, %v156
    %v173 = vmul.f32 %v157, %v157
    %v174 = vmul.f32 %v158, %v158
    %v175 = vmul.f32 %v159, %v159
    %v176 = vmul.f32 %v160, %v160
    %v177 = vmul.f32 %v161, %v161
    %v178 = vmul.f32 %v162, %v162
    %v179 = vmul.f32 %v163, %v163
    %v180 = vadd.f32 %v164, 0.0
    %v181 = vadd.f32 %v165, 0.0
    %v182 = vadd.f32 %v166, 0.0
    %v183 = vadd.f32 %v167, 0.0
    %v184 = vadd.f32 %v168, 0.0
    %v185 = vadd.f32 %v169, 0.0
    %v186 = vadd.f32 %v170, 0.0
    %v187 = vadd.f32 %v171, 0.0
    %v188 = vadd.f32 %v172, 0.0
    %v189 = vadd.f32 %v173, 0.0
    %v190 = vadd.f32 %v174, 0.0
    %v191 = vadd.f32 %v175, 0.0
    %v192 = vadd.f32 %v176, 0.0
    %v193 = vadd.f32 %v177, 0.0
    %v194 = vadd.f32 %v178, 0.0
    %v195 = vadd.f32 %v179, 0.0
    %196 = vset.pattern.permute.xlu0 1
    %197 = vperm.xlu0 %196, %v50
    %v198 = vpop.permute.xlu0 %197
    %200 = vset.pattern.permute.xlu0 1
    %201 = vperm.xlu0 %200, %v51
    %v202 = vpop.permute.xlu0 %201
    %204 = vset.pattern.permute.xlu0 1
    %205 = vperm.xlu0 %204, %v52
    %v206 = vpop.permute.xlu0 %205
    %208 = vset.pattern.permute.xlu0 1
    %209 = vperm.xlu0 %208, %v53
    %v210 = vpop.permute.xlu0 %209
    %212 = vset.pattern.permute.xlu0 1
    %213 = vperm.xlu0 %212, %v54
    %v214 = vpop.permute.xlu0 %213
    %216 = vset.pattern.permute.xlu0 1
    %217 = vperm.xlu0 %216, %v55
    %v218 = vpop.permute.xlu0 %217
    %220 = vset.pattern.permute.xlu0 1
    %221 = vperm.xlu0 %220, %v56
    %v222 = vpop.permute.xlu0 %221
    %224 = vset.pattern.permute.xlu0 1
    %225 = vperm.xlu0 %224, %v57
    %v226 = vpop.permute.xlu0 %225
    %228 = vset.pattern.permute.xlu0 1
    %229 = vperm.xlu0 %228, %v58
    %v230 = vpop.permute.xlu0 %229
    %232 = vset.pattern.permute.xlu0 1
    %233 = vperm.xlu0 %232, %v59
    %v234 = vpop.permute.xlu0 %233
    %236 = vset.pattern.permute.xlu0 1
    %237 = vperm.xlu0 %236, %v60
    %v238 = vpop.permute.xlu0 %237
    %240 = vset.pattern.permute.xlu0 1
    %241 = vperm.xlu0 %240, %v61
    %v242 = vpop.permute.xlu0 %241
    %244 = vset.pattern.permute.xlu0 1
    %245 = vperm.xlu0 %244, %v62
    %v246 = vpop.permute.xlu0 %245
    %248 = vset.pattern.permute.xlu0 1
    %249 = vperm.xlu0 %248, %v63
    %v250 = vpop.permute.xlu0 %249
    %252 = vset.pattern.permute.xlu0 1
    %253 = vperm.xlu0 %252, %v64
    %v254 = vpop.permute.xlu0 %253
    %256 = vset.pattern.permute.xlu0 1
    %257 = vperm.xlu0 %256, %v65
    %v258 = vpop.permute.xlu0 %257
    %v260 = vperm.slane %v66, 1
    %v261 = vsub.f32 %v198, %v260
    %v262 = vsub.f32 %v202, %v260
    %v263 = vsub.f32 %v206, %v260
    %v264 = vsub.f32 %v210, %v260
    %v265 = vsub.f32 %v214, %v260
    %v266 = vsub.f32 %v218, %v260
    %v267 = vsub.f32 %v222, %v260
    %v268 = vsub.f32 %v226, %v260
    %v269 = vsub.f32 %v230, %v260
    %v270 = vsub.f32 %v234, %v260
    %v271 = vsub.f32 %v238, %v260
    %v272 = vsub.f32 %v242, %v260
    %v273 = vsub.f32 %v246, %v260
    %v274 = vsub.f32 %v250, %v260
    %v275 = vsub.f32 %v254, %v260
    %v276 = vsub.f32 %v258, %v260
    %v277 = vmul.f32 %v261, %v261
    %v278 = vmul.f32 %v262, %v262
    %v279 = vmul.f32 %v263, %v263
    %v280 = vmul.f32 %v264, %v264
    %v281 = vmul.f32 %v265, %v265
    %v282 = vmul.f32 %v266, %v266
    %v283 = vmul.f32 %v267, %v267
    %v284 = vmul.f32 %v268, %v268
    %v285 = vmul.f32 %v269, %v269
    %v286 = vmul.f32 %v270, %v270
    %v287 = vmul.f32 %v271, %v271
    %v288 = vmul.f32 %v272, %v272
    %v289 = vmul.f32 %v273, %v273
    %v290 = vmul.f32 %v274, %v274
    %v291 = vmul.f32 %v275, %v275
    %v292 = vmul.f32 %v276, %v276
    %v293 = vadd.f32 %v180, %v277
    %v294 = vadd.f32 %v181, %v278
    %v295 = vadd.f32 %v182, %v279
    %v296 = vadd.f32 %v183, %v280
    %v297 = vadd.f32 %v184, %v281
    %v298 = vadd.f32 %v185, %v282
    %v299 = vadd.f32 %v186, %v283
    %v300 = vadd.f32 %v187, %v284
    %v301 = vadd.f32 %v188, %v285
    %v302 = vadd.f32 %v189, %v286
    %v303 = vadd.f32 %v190, %v287
    %v304 = vadd.f32 %v191, %v288
    %v305 = vadd.f32 %v192, %v289
    %v306 = vadd.f32 %v193, %v290
    %v307 = vadd.f32 %v194, %v291
    %v308 = vadd.f32 %v195, %v292
    %309 = vset.pattern.permute.xlu0 2
    %310 = vperm.xlu0 %309, %v50
    %v311 = vpop.permute.xlu0 %310
    %313 = vset.pattern.permute.xlu0 2
    %314 = vperm.xlu0 %313, %v51
    %v315 = vpop.permute.xlu0 %314
    %317 = vset.pattern.permute.xlu0 2
    %318 = vperm.xlu0 %317, %v52
    %v319 = vpop.permute.xlu0 %318
    %321 = vset.pattern.permute.xlu0 2
    %322 = vperm.xlu0 %321, %v53
    %v323 = vpop.permute.xlu0 %322
    %325 = vset.pattern.permute.xlu0 2
    %326 = vperm.xlu0 %325, %v54
    %v327 = vpop.permute.xlu0 %326
    %329 = vset.pattern.permute.xlu0 2
    %330 = vperm.xlu0 %329, %v55
    %v331 = vpop.permute.xlu0 %330
    %333 = vset.pattern.permute.xlu0 2
    %334 = vperm.xlu0 %333, %v56
    %v335 = vpop.permute.xlu0 %334
    %337 = vset.pattern.permute.xlu0 2
    %338 = vperm.xlu0 %337, %v57
    %v339 = vpop.permute.xlu0 %338
    %341 = vset.pattern.permute.xlu0 2
    %342 = vperm.xlu0 %341, %v58
    %v343 = vpop.permute.xlu0 %342
    %345 = vset.pattern.permute.xlu0 2
    %346 = vperm.xlu0 %345, %v59
    %v347 = vpop.permute.xlu0 %346
    %349 = vset.pattern.permute.xlu0 2
    %350 = vperm.xlu0 %349, %v60
    %v351 = vpop.permute.xlu0 %350
    %353 = vset.pattern.permute.xlu0 2
    %354 = vperm.xlu0 %353, %v61
    %v355 = vpop.permute.xlu0 %354
    %357 = vset.pattern.permute.xlu0 2
    %358 = vperm.xlu0 %357, %v62
    %v359 = vpop.permute.xlu0 %358
    %361 = vset.pattern.permute.xlu0 2
    %362 = vperm.xlu0 %361, %v63
    %v363 = vpop.permute.xlu0 %362
    %365 = vset.pattern.permute.xlu0 2
    %366 = vperm.xlu0 %365, %v64
    %v367 = vpop.permute.xlu0 %366
    %369 = vset.pattern.permute.xlu0 2
    %370 = vperm.xlu0 %369, %v65
    %v371 = vpop.permute.xlu0 %370
    %v373 = vperm.slane %v66, 2
    %v374 = vsub.f32 %v311, %v373
    %v375 = vsub.f32 %v315, %v373
    %v376 = vsub.f32 %v319, %v373
    %v377 = vsub.f32 %v323, %v373
    %v378 = vsub.f32 %v327, %v373
    %v379 = vsub.f32 %v331, %v373
    %v380 = vsub.f32 %v335, %v373
    %v381 = vsub.f32 %v339, %v373
    %v382 = vsub.f32 %v343, %v373
    %v383 = vsub.f32 %v347, %v373
    %v384 = vsub.f32 %v351, %v373
    %v385 = vsub.f32 %v355, %v373
    %v386 = vsub.f32 %v359, %v373
    %v387 = vsub.f32 %v363, %v373
    %v388 = vsub.f32 %v367, %v373
    %v389 = vsub.f32 %v371, %v373
    %v390 = vmul.f32 %v374, %v374
    %v391 = vmul.f32 %v375, %v375
    %v392 = vmul.f32 %v376, %v376
    %v393 = vmul.f32 %v377, %v377
    %v394 = vmul.f32 %v378, %v378
    %v395 = vmul.f32 %v379, %v379
    %v396 = vmul.f32 %v380, %v380
    %v397 = vmul.f32 %v381, %v381
    %v398 = vmul.f32 %v382, %v382
    %v399 = vmul.f32 %v383, %v383
    %v400 = vmul.f32 %v384, %v384
    %v401 = vmul.f32 %v385, %v385
    %v402 = vmul.f32 %v386, %v386
    %v403 = vmul.f32 %v387, %v387
    %v404 = vmul.f32 %v388, %v388
    %v405 = vmul.f32 %v389, %v389
    %v406 = vadd.f32 %v293, %v390
    %v407 = vadd.f32 %v294, %v391
    %v408 = vadd.f32 %v295, %v392
    %v409 = vadd.f32 %v296, %v393
    %v410 = vadd.f32 %v297, %v394
    %v411 = vadd.f32 %v298, %v395
    %v412 = vadd.f32 %v299, %v396
    %v413 = vadd.f32 %v300, %v397
    %v414 = vadd.f32 %v301, %v398
    %v415 = vadd.f32 %v302, %v399
    %v416 = vadd.f32 %v303, %v400
    %v417 = vadd.f32 %v304, %v401
    %v418 = vadd.f32 %v305, %v402
    %v419 = vadd.f32 %v306, %v403
    %v420 = vadd.f32 %v307, %v404
    %v421 = vadd.f32 %v308, %v405
    %vm422 = vcmp.lt.f32.partialorder %v406, 0.0256
    %vm423 = vcmp.lt.f32.partialorder %v407, 0.0256
    %vm424 = vcmp.lt.f32.partialorder %v408, 0.0256
    %vm425 = vcmp.lt.f32.partialorder %v409, 0.0256
    %vm426 = vcmp.lt.f32.partialorder %v410, 0.0256
    %vm427 = vcmp.lt.f32.partialorder %v411, 0.0256
    %vm428 = vcmp.lt.f32.partialorder %v412, 0.0256
    %vm429 = vcmp.lt.f32.partialorder %v413, 0.0256
    %vm430 = vcmp.lt.f32.partialorder %v414, 0.0256
    %vm431 = vcmp.lt.f32.partialorder %v415, 0.0256
    %vm432 = vcmp.lt.f32.partialorder %v416, 0.0256
    %vm433 = vcmp.lt.f32.partialorder %v417, 0.0256
    %vm434 = vcmp.lt.f32.partialorder %v418, 0.0256
    %vm435 = vcmp.lt.f32.partialorder %v419, 0.0256
    %vm436 = vcmp.lt.f32.partialorder %v420, 0.0256
    %vm437 = vcmp.lt.f32.partialorder %v421, 0.0256
    %vm438 = vmand %vm34, %vm422
    %vm439 = vmand %vm35, %vm423
    %vm440 = vmand %vm36, %vm424
    %vm441 = vmand %vm37, %vm425
    %vm442 = vmand %vm38, %vm426
    %vm443 = vmand %vm39, %vm427
    %vm444 = vmand %vm40, %vm428
    %vm445 = vmand %vm41, %vm429
    %vm446 = vmand %vm42, %vm430
    %vm447 = vmand %vm43, %vm431
    %vm448 = vmand %vm44, %vm432
    %vm449 = vmand %vm45, %vm433
    %vm450 = vmand %vm46, %vm434
    %vm451 = vmand %vm47, %vm435
    %vm452 = vmand %vm48, %vm436
    %vm453 = vmand %vm49, %vm437
    %v454 = vrsqrt.pop %v406
    %v455 = vmul.f32 %v454, %v406
    %v456 = vmul.f32 %v455, %v454
    %v457 = vmul.f32 0.5, %v456
    %v458 = vsub.f32 1.5, %v457
    %v459 = vmul.f32 %v454, %v458
    %v460 = vmul.f32 %v406, %v459
    %vm461 = vcmp.eq.f32.partialorder %v406, inf
    %v462 = vsel %vm461, %v406, %v460
    %vm463 = vcmp.eq.f32.partialorder %v406, 0.0
    %v464 = vand.u32 %v406, 2147483648
    %v465 = vsel %vm463, %v464, %v462
    %v466 = vrsqrt.pop %v407
    %v467 = vmul.f32 %v466, %v407
    %v468 = vmul.f32 %v467, %v466
    %v469 = vmul.f32 0.5, %v468
    %v470 = vsub.f32 1.5, %v469
    %v471 = vmul.f32 %v466, %v470
    %v472 = vmul.f32 %v407, %v471
    %vm473 = vcmp.eq.f32.partialorder %v407, inf
    %v474 = vsel %vm473, %v407, %v472
    %vm475 = vcmp.eq.f32.partialorder %v407, 0.0
    %v476 = vand.u32 %v407, 2147483648
    %v477 = vsel %vm475, %v476, %v474
    %v478 = vrsqrt.pop %v408
    %v479 = vmul.f32 %v478, %v408
    %v480 = vmul.f32 %v479, %v478
    %v481 = vmul.f32 0.5, %v480
    %v482 = vsub.f32 1.5, %v481
    %v483 = vmul.f32 %v478, %v482
    %v484 = vmul.f32 %v408, %v483
    %vm485 = vcmp.eq.f32.partialorder %v408, inf
    %v486 = vsel %vm485, %v408, %v484
    %vm487 = vcmp.eq.f32.partialorder %v408, 0.0
    %v488 = vand.u32 %v408, 2147483648
    %v489 = vsel %vm487, %v488, %v486
    %v490 = vrsqrt.pop %v409
    %v491 = vmul.f32 %v490, %v409
    %v492 = vmul.f32 %v491, %v490
    %v493 = vmul.f32 0.5, %v492
    %v494 = vsub.f32 1.5, %v493
    %v495 = vmul.f32 %v490, %v494
    %v496 = vmul.f32 %v409, %v495
    %vm497 = vcmp.eq.f32.partialorder %v409, inf
    %v498 = vsel %vm497, %v409, %v496
    %vm499 = vcmp.eq.f32.partialorder %v409, 0.0
    %v500 = vand.u32 %v409, 2147483648
    %v501 = vsel %vm499, %v500, %v498
    %v502 = vrsqrt.pop %v410
    %v503 = vmul.f32 %v502, %v410
    %v504 = vmul.f32 %v503, %v502
    %v505 = vmul.f32 0.5, %v504
    %v506 = vsub.f32 1.5, %v505
    %v507 = vmul.f32 %v502, %v506
    %v508 = vmul.f32 %v410, %v507
    %vm509 = vcmp.eq.f32.partialorder %v410, inf
    %v510 = vsel %vm509, %v410, %v508
    %vm511 = vcmp.eq.f32.partialorder %v410, 0.0
    %v512 = vand.u32 %v410, 2147483648
    %v513 = vsel %vm511, %v512, %v510
    %v514 = vrsqrt.pop %v411
    %v515 = vmul.f32 %v514, %v411
    %v516 = vmul.f32 %v515, %v514
    %v517 = vmul.f32 0.5, %v516
    %v518 = vsub.f32 1.5, %v517
    %v519 = vmul.f32 %v514, %v518
    %v520 = vmul.f32 %v411, %v519
    %vm521 = vcmp.eq.f32.partialorder %v411, inf
    %v522 = vsel %vm521, %v411, %v520
    %vm523 = vcmp.eq.f32.partialorder %v411, 0.0
    %v524 = vand.u32 %v411, 2147483648
    %v525 = vsel %vm523, %v524, %v522
    %v526 = vrsqrt.pop %v412
    %v527 = vmul.f32 %v526, %v412
    %v528 = vmul.f32 %v527, %v526
    %v529 = vmul.f32 0.5, %v528
    %v530 = vsub.f32 1.5, %v529
    %v531 = vmul.f32 %v526, %v530
    %v532 = vmul.f32 %v412, %v531
    %vm533 = vcmp.eq.f32.partialorder %v412, inf
    %v534 = vsel %vm533, %v412, %v532
    %vm535 = vcmp.eq.f32.partialorder %v412, 0.0
    %v536 = vand.u32 %v412, 2147483648
    %v537 = vsel %vm535, %v536, %v534
    %v538 = vrsqrt.pop %v413
    %v539 = vmul.f32 %v538, %v413
    %v540 = vmul.f32 %v539, %v538
    %v541 = vmul.f32 0.5, %v540
    %v542 = vsub.f32 1.5, %v541
    %v543 = vmul.f32 %v538, %v542
    %v544 = vmul.f32 %v413, %v543
    %vm545 = vcmp.eq.f32.partialorder %v413, inf
    %v546 = vsel %vm545, %v413, %v544
    %vm547 = vcmp.eq.f32.partialorder %v413, 0.0
    %v548 = vand.u32 %v413, 2147483648
    %v549 = vsel %vm547, %v548, %v546
    %v550 = vrsqrt.pop %v414
    %v551 = vmul.f32 %v550, %v414
    %v552 = vmul.f32 %v551, %v550
    %v553 = vmul.f32 0.5, %v552
    %v554 = vsub.f32 1.5, %v553
    %v555 = vmul.f32 %v550, %v554
    %v556 = vmul.f32 %v414, %v555
    %vm557 = vcmp.eq.f32.partialorder %v414, inf
    %v558 = vsel %vm557, %v414, %v556
    %vm559 = vcmp.eq.f32.partialorder %v414, 0.0
    %v560 = vand.u32 %v414, 2147483648
    %v561 = vsel %vm559, %v560, %v558
    %v562 = vrsqrt.pop %v415
    %v563 = vmul.f32 %v562, %v415
    %v564 = vmul.f32 %v563, %v562
    %v565 = vmul.f32 0.5, %v564
    %v566 = vsub.f32 1.5, %v565
    %v567 = vmul.f32 %v562, %v566
    %v568 = vmul.f32 %v415, %v567
    %vm569 = vcmp.eq.f32.partialorder %v415, inf
    %v570 = vsel %vm569, %v415, %v568
    %vm571 = vcmp.eq.f32.partialorder %v415, 0.0
    %v572 = vand.u32 %v415, 2147483648
    %v573 = vsel %vm571, %v572, %v570
    %v574 = vrsqrt.pop %v416
    %v575 = vmul.f32 %v574, %v416
    %v576 = vmul.f32 %v575, %v574
    %v577 = vmul.f32 0.5, %v576
    %v578 = vsub.f32 1.5, %v577
    %v579 = vmul.f32 %v574, %v578
    %v580 = vmul.f32 %v416, %v579
    %vm581 = vcmp.eq.f32.partialorder %v416, inf
    %v582 = vsel %vm581, %v416, %v580
    %vm583 = vcmp.eq.f32.partialorder %v416, 0.0
    %v584 = vand.u32 %v416, 2147483648
    %v585 = vsel %vm583, %v584, %v582
    %v586 = vrsqrt.pop %v417
    %v587 = vmul.f32 %v586, %v417
    %v588 = vmul.f32 %v587, %v586
    %v589 = vmul.f32 0.5, %v588
    %v590 = vsub.f32 1.5, %v589
    %v591 = vmul.f32 %v586, %v590
    %v592 = vmul.f32 %v417, %v591
    %vm593 = vcmp.eq.f32.partialorder %v417, inf
    %v594 = vsel %vm593, %v417, %v592
    %vm595 = vcmp.eq.f32.partialorder %v417, 0.0
    %v596 = vand.u32 %v417, 2147483648
    %v597 = vsel %vm595, %v596, %v594
    %v598 = vrsqrt.pop %v418
    %v599 = vmul.f32 %v598, %v418
    %v600 = vmul.f32 %v599, %v598
    %v601 = vmul.f32 0.5, %v600
    %v602 = vsub.f32 1.5, %v601
    %v603 = vmul.f32 %v598, %v602
    %v604 = vmul.f32 %v418, %v603
    %vm605 = vcmp.eq.f32.partialorder %v418, inf
    %v606 = vsel %vm605, %v418, %v604
    %vm607 = vcmp.eq.f32.partialorder %v418, 0.0
    %v608 = vand.u32 %v418, 2147483648
    %v609 = vsel %vm607, %v608, %v606
    %v610 = vrsqrt.pop %v419
    %v611 = vmul.f32 %v610, %v419
    %v612 = vmul.f32 %v611, %v610
    %v613 = vmul.f32 0.5, %v612
    %v614 = vsub.f32 1.5, %v613
    %v615 = vmul.f32 %v610, %v614
    %v616 = vmul.f32 %v419, %v615
    %vm617 = vcmp.eq.f32.partialorder %v419, inf
    %v618 = vsel %vm617, %v419, %v616
    %vm619 = vcmp.eq.f32.partialorder %v419, 0.0
    %v620 = vand.u32 %v419, 2147483648
    %v621 = vsel %vm619, %v620, %v618
    %v622 = vrsqrt.pop %v420
    %v623 = vmul.f32 %v622, %v420
    %v624 = vmul.f32 %v623, %v622
    %v625 = vmul.f32 0.5, %v624
    %v626 = vsub.f32 1.5, %v625
    %v627 = vmul.f32 %v622, %v626
    %v628 = vmul.f32 %v420, %v627
    %vm629 = vcmp.eq.f32.partialorder %v420, inf
    %v630 = vsel %vm629, %v420, %v628
    %vm631 = vcmp.eq.f32.partialorder %v420, 0.0
    %v632 = vand.u32 %v420, 2147483648
    %v633 = vsel %vm631, %v632, %v630
    %v634 = vrsqrt.pop %v421
    %v635 = vmul.f32 %v634, %v421
    %v636 = vmul.f32 %v635, %v634
    %v637 = vmul.f32 0.5, %v636
    %v638 = vsub.f32 1.5, %v637
    %v639 = vmul.f32 %v634, %v638
    %v640 = vmul.f32 %v421, %v639
    %vm641 = vcmp.eq.f32.partialorder %v421, inf
    %v642 = vsel %vm641, %v421, %v640
    %vm643 = vcmp.eq.f32.partialorder %v421, 0.0
    %v644 = vand.u32 %v421, 2147483648
    %v645 = vsel %vm643, %v644, %v642
    %v646 = vsub.f32 0.16, %v465
    %v647 = vsub.f32 0.16, %v477
    %v648 = vsub.f32 0.16, %v489
    %v649 = vsub.f32 0.16, %v501
    %v650 = vsub.f32 0.16, %v513
    %v651 = vsub.f32 0.16, %v525
    %v652 = vsub.f32 0.16, %v537
    %v653 = vsub.f32 0.16, %v549
    %v654 = vsub.f32 0.16, %v561
    %v655 = vsub.f32 0.16, %v573
    %v656 = vsub.f32 0.16, %v585
    %v657 = vsub.f32 0.16, %v597
    %v658 = vsub.f32 0.16, %v609
    %v659 = vsub.f32 0.16, %v621
    %v660 = vsub.f32 0.16, %v633
    %v661 = vsub.f32 0.16, %v645
    %v662 = vsel %vm438, %v646, 0.0
    %v663 = vsel %vm439, %v647, 0.0
    %v664 = vsel %vm440, %v648, 0.0
    %v665 = vsel %vm441, %v649, 0.0
    %v666 = vsel %vm442, %v650, 0.0
    %v667 = vsel %vm443, %v651, 0.0
    %v668 = vsel %vm444, %v652, 0.0
    %v669 = vsel %vm445, %v653, 0.0
    %v670 = vsel %vm446, %v654, 0.0
    %v671 = vsel %vm447, %v655, 0.0
    %v672 = vsel %vm448, %v656, 0.0
    %v673 = vsel %vm449, %v657, 0.0
    %v674 = vsel %vm450, %v658, 0.0
    %v675 = vsel %vm451, %v659, 0.0
    %v676 = vsel %vm452, %v660, 0.0
    %v677 = vsel %vm453, %v661, 0.0
    %v678 = vsel %vm438, 1, 0
    %v679 = vsel %vm439, 1, 0
    %v680 = vsel %vm440, 1, 0
    %v681 = vsel %vm441, 1, 0
    %v682 = vsel %vm442, 1, 0
    %v683 = vsel %vm443, 1, 0
    %v684 = vsel %vm444, 1, 0
    %v685 = vsel %vm445, 1, 0
    %v686 = vsel %vm446, 1, 0
    %v687 = vsel %vm447, 1, 0
    %v688 = vsel %vm448, 1, 0
    %v689 = vsel %vm449, 1, 0
    %v690 = vsel %vm450, 1, 0
    %v691 = vsel %vm451, 1, 0
    %v692 = vsel %vm452, 1, 0
    %v693 = vsel %vm453, 1, 0
    %v694 = vcvt.s32.f32 %v678
    %v695 = vcvt.s32.f32 %v679
    %v696 = vcvt.s32.f32 %v680
    %v697 = vcvt.s32.f32 %v681
    %v698 = vcvt.s32.f32 %v682
    %v699 = vcvt.s32.f32 %v683
    %v700 = vcvt.s32.f32 %v684
    %v701 = vcvt.s32.f32 %v685
    %v702 = vcvt.s32.f32 %v686
    %v703 = vcvt.s32.f32 %v687
    %v704 = vcvt.s32.f32 %v688
    %v705 = vcvt.s32.f32 %v689
    %v706 = vcvt.s32.f32 %v690
    %v707 = vcvt.s32.f32 %v691
    %v708 = vcvt.s32.f32 %v692
    %v709 = vcvt.s32.f32 %v693
    %v710 = vadd.f32 %v694, %v695
    %v711 = vadd.f32 %v710, %v696
    %v712 = vadd.f32 %v711, %v697
    %v713 = vadd.f32 %v712, %v698
    %v714 = vadd.f32 %v713, %v699
    %v715 = vadd.f32 %v714, %v700
    %v716 = vadd.f32 %v715, %v701
    %v717 = vadd.f32 %v716, %v702
    %v718 = vadd.f32 %v717, %v703
    %v719 = vadd.f32 %v718, %v704
    %v720 = vadd.f32 %v719, %v705
    %v721 = vadd.f32 %v720, %v706
    %v722 = vadd.f32 %v721, %v707
    %v723 = vadd.f32 %v722, %v708
    %v724 = vadd.f32 %v723, %v709
    %v725 = vadd.f32 %v724, 0.0
    %v726 = vmul.f32 %v662, %v662
    %v727 = vmul.f32 %v663, %v663
    %v728 = vmul.f32 %v664, %v664
    %v729 = vmul.f32 %v665, %v665
    %v730 = vmul.f32 %v666, %v666
    %v731 = vmul.f32 %v667, %v667
    %v732 = vmul.f32 %v668, %v668
    %v733 = vmul.f32 %v669, %v669
    %v734 = vmul.f32 %v670, %v670
    %v735 = vmul.f32 %v671, %v671
    %v736 = vmul.f32 %v672, %v672
    %v737 = vmul.f32 %v673, %v673
    %v738 = vmul.f32 %v674, %v674
    %v739 = vmul.f32 %v675, %v675
    %v740 = vmul.f32 %v676, %v676
    %v741 = vmul.f32 %v677, %v677
    %v742 = vadd.f32 %v726, %v727
    %v743 = vadd.f32 %v742, %v728
    %v744 = vadd.f32 %v743, %v729
    %v745 = vadd.f32 %v744, %v730
    %v746 = vadd.f32 %v745, %v731
    %v747 = vadd.f32 %v746, %v732
    %v748 = vadd.f32 %v747, %v733
    %v749 = vadd.f32 %v748, %v734
    %v750 = vadd.f32 %v749, %v735
    %v751 = vadd.f32 %v750, %v736
    %v752 = vadd.f32 %v751, %v737
    %v753 = vadd.f32 %v752, %v738
    %v754 = vadd.f32 %v753, %v739
    %v755 = vadd.f32 %v754, %v740
    %v756 = vadd.f32 %v755, %v741
    %v757 = vadd.f32 %v756, 0.0
    %s758 = scalar_lea.vmem %s0, 128
    %v759 = vld [vmem:[%s758] sm:$0xff]
    %v760 = vld [vmem:[%s758 + $0x8] sm:$0xff]
    %v761 = vld [vmem:[%s758 + $0x10] sm:$0xff]
    %v762 = vld [vmem:[%s758 + $0x18] sm:$0xff]
    %v763 = vld [vmem:[%s758 + $0x20] sm:$0xff]
    %v764 = vld [vmem:[%s758 + $0x28] sm:$0xff]
    %v765 = vld [vmem:[%s758 + $0x30] sm:$0xff]
    %v766 = vld [vmem:[%s758 + $0x38] sm:$0xff]
    %v767 = vld [vmem:[%s758 + $0x40] sm:$0xff]
    %v768 = vld [vmem:[%s758 + $0x48] sm:$0xff]
    %v769 = vld [vmem:[%s758 + $0x50] sm:$0xff]
    %v770 = vld [vmem:[%s758 + $0x58] sm:$0xff]
    %v771 = vld [vmem:[%s758 + $0x60] sm:$0xff]
    %v772 = vld [vmem:[%s758 + $0x68] sm:$0xff]
    %v773 = vld [vmem:[%s758 + $0x70] sm:$0xff]
    %v774 = vld [vmem:[%s758 + $0x78] sm:$0xff]
    %s775 = scalar_lea.vmem %s1, 4
    %v776 = vld [vmem:[%s775] sm:$0x7]
    %778 = vset.pattern.permute.xlu0 0
    %779 = vperm.xlu0 %778, %v759
    %v780 = vpop.permute.xlu0 %779
    %783 = vset.pattern.permute.xlu0 0
    %784 = vperm.xlu0 %783, %v760
    %v785 = vpop.permute.xlu0 %784
    %788 = vset.pattern.permute.xlu0 0
    %789 = vperm.xlu0 %788, %v761
    %v790 = vpop.permute.xlu0 %789
    %793 = vset.pattern.permute.xlu0 0
    %794 = vperm.xlu0 %793, %v762
    %v795 = vpop.permute.xlu0 %794
    %798 = vset.pattern.permute.xlu0 0
    %799 = vperm.xlu0 %798, %v763
    %v800 = vpop.permute.xlu0 %799
    %803 = vset.pattern.permute.xlu0 0
    %804 = vperm.xlu0 %803, %v764
    %v805 = vpop.permute.xlu0 %804
    %808 = vset.pattern.permute.xlu0 0
    %809 = vperm.xlu0 %808, %v765
    %v810 = vpop.permute.xlu0 %809
    %813 = vset.pattern.permute.xlu0 0
    %814 = vperm.xlu0 %813, %v766
    %v815 = vpop.permute.xlu0 %814
    %818 = vset.pattern.permute.xlu0 0
    %819 = vperm.xlu0 %818, %v767
    %v820 = vpop.permute.xlu0 %819
    %823 = vset.pattern.permute.xlu0 0
    %824 = vperm.xlu0 %823, %v768
    %v825 = vpop.permute.xlu0 %824
    %828 = vset.pattern.permute.xlu0 0
    %829 = vperm.xlu0 %828, %v769
    %v830 = vpop.permute.xlu0 %829
    %833 = vset.pattern.permute.xlu0 0
    %834 = vperm.xlu0 %833, %v770
    %v835 = vpop.permute.xlu0 %834
    %838 = vset.pattern.permute.xlu0 0
    %839 = vperm.xlu0 %838, %v771
    %v840 = vpop.permute.xlu0 %839
    %843 = vset.pattern.permute.xlu0 0
    %844 = vperm.xlu0 %843, %v772
    %v845 = vpop.permute.xlu0 %844
    %848 = vset.pattern.permute.xlu0 0
    %849 = vperm.xlu0 %848, %v773
    %v850 = vpop.permute.xlu0 %849
    %853 = vset.pattern.permute.xlu0 0
    %854 = vperm.xlu0 %853, %v774
    %v855 = vpop.permute.xlu0 %854
    %v857 = vperm.slane %v776, 0
    %v858 = vsub.f32 %v780, %v857
    %v859 = vsub.f32 %v785, %v857
    %v860 = vsub.f32 %v790, %v857
    %v861 = vsub.f32 %v795, %v857
    %v862 = vsub.f32 %v800, %v857
    %v863 = vsub.f32 %v805, %v857
    %v864 = vsub.f32 %v810, %v857
    %v865 = vsub.f32 %v815, %v857
    %v866 = vsub.f32 %v820, %v857
    %v867 = vsub.f32 %v825, %v857
    %v868 = vsub.f32 %v830, %v857
    %v869 = vsub.f32 %v835, %v857
    %v870 = vsub.f32 %v840, %v857
    %v871 = vsub.f32 %v845, %v857
    %v872 = vsub.f32 %v850, %v857
    %v873 = vsub.f32 %v855, %v857
    %v874 = vmul.f32 %v858, %v858
    %v875 = vmul.f32 %v859, %v859
    %v876 = vmul.f32 %v860, %v860
    %v877 = vmul.f32 %v861, %v861
    %v878 = vmul.f32 %v862, %v862
    %v879 = vmul.f32 %v863, %v863
    %v880 = vmul.f32 %v864, %v864
    %v881 = vmul.f32 %v865, %v865
    %v882 = vmul.f32 %v866, %v866
    %v883 = vmul.f32 %v867, %v867
    %v884 = vmul.f32 %v868, %v868
    %v885 = vmul.f32 %v869, %v869
    %v886 = vmul.f32 %v870, %v870
    %v887 = vmul.f32 %v871, %v871
    %v888 = vmul.f32 %v872, %v872
    %v889 = vmul.f32 %v873, %v873
    %v890 = vadd.f32 %v874, 0.0
    %v891 = vadd.f32 %v875, 0.0
    %v892 = vadd.f32 %v876, 0.0
    %v893 = vadd.f32 %v877, 0.0
    %v894 = vadd.f32 %v878, 0.0
    %v895 = vadd.f32 %v879, 0.0
    %v896 = vadd.f32 %v880, 0.0
    %v897 = vadd.f32 %v881, 0.0
    %v898 = vadd.f32 %v882, 0.0
    %v899 = vadd.f32 %v883, 0.0
    %v900 = vadd.f32 %v884, 0.0
    %v901 = vadd.f32 %v885, 0.0
    %v902 = vadd.f32 %v886, 0.0
    %v903 = vadd.f32 %v887, 0.0
    %v904 = vadd.f32 %v888, 0.0
    %v905 = vadd.f32 %v889, 0.0
    %906 = vset.pattern.permute.xlu0 1
    %907 = vperm.xlu0 %906, %v759
    %v908 = vpop.permute.xlu0 %907
    %910 = vset.pattern.permute.xlu0 1
    %911 = vperm.xlu0 %910, %v760
    %v912 = vpop.permute.xlu0 %911
    %914 = vset.pattern.permute.xlu0 1
    %915 = vperm.xlu0 %914, %v761
    %v916 = vpop.permute.xlu0 %915
    %918 = vset.pattern.permute.xlu0 1
    %919 = vperm.xlu0 %918, %v762
    %v920 = vpop.permute.xlu0 %919
    %922 = vset.pattern.permute.xlu0 1
    %923 = vperm.xlu0 %922, %v763
    %v924 = vpop.permute.xlu0 %923
    %926 = vset.pattern.permute.xlu0 1
    %927 = vperm.xlu0 %926, %v764
    %v928 = vpop.permute.xlu0 %927
    %930 = vset.pattern.permute.xlu0 1
    %931 = vperm.xlu0 %930, %v765
    %v932 = vpop.permute.xlu0 %931
    %934 = vset.pattern.permute.xlu0 1
    %935 = vperm.xlu0 %934, %v766
    %v936 = vpop.permute.xlu0 %935
    %938 = vset.pattern.permute.xlu0 1
    %939 = vperm.xlu0 %938, %v767
    %v940 = vpop.permute.xlu0 %939
    %942 = vset.pattern.permute.xlu0 1
    %943 = vperm.xlu0 %942, %v768
    %v944 = vpop.permute.xlu0 %943
    %946 = vset.pattern.permute.xlu0 1
    %947 = vperm.xlu0 %946, %v769
    %v948 = vpop.permute.xlu0 %947
    %950 = vset.pattern.permute.xlu0 1
    %951 = vperm.xlu0 %950, %v770
    %v952 = vpop.permute.xlu0 %951
    %954 = vset.pattern.permute.xlu0 1
    %955 = vperm.xlu0 %954, %v771
    %v956 = vpop.permute.xlu0 %955
    %958 = vset.pattern.permute.xlu0 1
    %959 = vperm.xlu0 %958, %v772
    %v960 = vpop.permute.xlu0 %959
    %962 = vset.pattern.permute.xlu0 1
    %963 = vperm.xlu0 %962, %v773
    %v964 = vpop.permute.xlu0 %963
    %966 = vset.pattern.permute.xlu0 1
    %967 = vperm.xlu0 %966, %v774
    %v968 = vpop.permute.xlu0 %967
    %v970 = vperm.slane %v776, 1
    %v971 = vsub.f32 %v908, %v970
    %v972 = vsub.f32 %v912, %v970
    %v973 = vsub.f32 %v916, %v970
    %v974 = vsub.f32 %v920, %v970
    %v975 = vsub.f32 %v924, %v970
    %v976 = vsub.f32 %v928, %v970
    %v977 = vsub.f32 %v932, %v970
    %v978 = vsub.f32 %v936, %v970
    %v979 = vsub.f32 %v940, %v970
    %v980 = vsub.f32 %v944, %v970
    %v981 = vsub.f32 %v948, %v970
    %v982 = vsub.f32 %v952, %v970
    %v983 = vsub.f32 %v956, %v970
    %v984 = vsub.f32 %v960, %v970
    %v985 = vsub.f32 %v964, %v970
    %v986 = vsub.f32 %v968, %v970
    %v987 = vmul.f32 %v971, %v971
    %v988 = vmul.f32 %v972, %v972
    %v989 = vmul.f32 %v973, %v973
    %v990 = vmul.f32 %v974, %v974
    %v991 = vmul.f32 %v975, %v975
    %v992 = vmul.f32 %v976, %v976
    %v993 = vmul.f32 %v977, %v977
    %v994 = vmul.f32 %v978, %v978
    %v995 = vmul.f32 %v979, %v979
    %v996 = vmul.f32 %v980, %v980
    %v997 = vmul.f32 %v981, %v981
    %v998 = vmul.f32 %v982, %v982
    %v999 = vmul.f32 %v983, %v983
    %v1000 = vmul.f32 %v984, %v984
    %v1001 = vmul.f32 %v985, %v985
    %v1002 = vmul.f32 %v986, %v986
    %v1003 = vadd.f32 %v890, %v987
    %v1004 = vadd.f32 %v891, %v988
    %v1005 = vadd.f32 %v892, %v989
    %v1006 = vadd.f32 %v893, %v990
    %v1007 = vadd.f32 %v894, %v991
    %v1008 = vadd.f32 %v895, %v992
    %v1009 = vadd.f32 %v896, %v993
    %v1010 = vadd.f32 %v897, %v994
    %v1011 = vadd.f32 %v898, %v995
    %v1012 = vadd.f32 %v899, %v996
    %v1013 = vadd.f32 %v900, %v997
    %v1014 = vadd.f32 %v901, %v998
    %v1015 = vadd.f32 %v902, %v999
    %v1016 = vadd.f32 %v903, %v1000
    %v1017 = vadd.f32 %v904, %v1001
    %v1018 = vadd.f32 %v905, %v1002
    %1019 = vset.pattern.permute.xlu0 2
    %1020 = vperm.xlu0 %1019, %v759
    %v1021 = vpop.permute.xlu0 %1020
    %1023 = vset.pattern.permute.xlu0 2
    %1024 = vperm.xlu0 %1023, %v760
    %v1025 = vpop.permute.xlu0 %1024
    %1027 = vset.pattern.permute.xlu0 2
    %1028 = vperm.xlu0 %1027, %v761
    %v1029 = vpop.permute.xlu0 %1028
    %1031 = vset.pattern.permute.xlu0 2
    %1032 = vperm.xlu0 %1031, %v762
    %v1033 = vpop.permute.xlu0 %1032
    %1035 = vset.pattern.permute.xlu0 2
    %1036 = vperm.xlu0 %1035, %v763
    %v1037 = vpop.permute.xlu0 %1036
    %1039 = vset.pattern.permute.xlu0 2
    %1040 = vperm.xlu0 %1039, %v764
    %v1041 = vpop.permute.xlu0 %1040
    %1043 = vset.pattern.permute.xlu0 2
    %1044 = vperm.xlu0 %1043, %v765
    %v1045 = vpop.permute.xlu0 %1044
    %1047 = vset.pattern.permute.xlu0 2
    %1048 = vperm.xlu0 %1047, %v766
    %v1049 = vpop.permute.xlu0 %1048
    %1051 = vset.pattern.permute.xlu0 2
    %1052 = vperm.xlu0 %1051, %v767
    %v1053 = vpop.permute.xlu0 %1052
    %1055 = vset.pattern.permute.xlu0 2
    %1056 = vperm.xlu0 %1055, %v768
    %v1057 = vpop.permute.xlu0 %1056
    %1059 = vset.pattern.permute.xlu0 2
    %1060 = vperm.xlu0 %1059, %v769
    %v1061 = vpop.permute.xlu0 %1060
    %1063 = vset.pattern.permute.xlu0 2
    %1064 = vperm.xlu0 %1063, %v770
    %v1065 = vpop.permute.xlu0 %1064
    %1067 = vset.pattern.permute.xlu0 2
    %1068 = vperm.xlu0 %1067, %v771
    %v1069 = vpop.permute.xlu0 %1068
    %1071 = vset.pattern.permute.xlu0 2
    %1072 = vperm.xlu0 %1071, %v772
    %v1073 = vpop.permute.xlu0 %1072
    %1075 = vset.pattern.permute.xlu0 2
    %1076 = vperm.xlu0 %1075, %v773
    %v1077 = vpop.permute.xlu0 %1076
    %1079 = vset.pattern.permute.xlu0 2
    %1080 = vperm.xlu0 %1079, %v774
    %v1081 = vpop.permute.xlu0 %1080
    %v1083 = vperm.slane %v776, 2
    %v1084 = vsub.f32 %v1021, %v1083
    %v1085 = vsub.f32 %v1025, %v1083
    %v1086 = vsub.f32 %v1029, %v1083
    %v1087 = vsub.f32 %v1033, %v1083
    %v1088 = vsub.f32 %v1037, %v1083
    %v1089 = vsub.f32 %v1041, %v1083
    %v1090 = vsub.f32 %v1045, %v1083
    %v1091 = vsub.f32 %v1049, %v1083
    %v1092 = vsub.f32 %v1053, %v1083
    %v1093 = vsub.f32 %v1057, %v1083
    %v1094 = vsub.f32 %v1061, %v1083
    %v1095 = vsub.f32 %v1065, %v1083
    %v1096 = vsub.f32 %v1069, %v1083
    %v1097 = vsub.f32 %v1073, %v1083
    %v1098 = vsub.f32 %v1077, %v1083
    %v1099 = vsub.f32 %v1081, %v1083
    %v1100 = vmul.f32 %v1084, %v1084
    %v1101 = vmul.f32 %v1085, %v1085
    %v1102 = vmul.f32 %v1086, %v1086
    %v1103 = vmul.f32 %v1087, %v1087
    %v1104 = vmul.f32 %v1088, %v1088
    %v1105 = vmul.f32 %v1089, %v1089
    %v1106 = vmul.f32 %v1090, %v1090
    %v1107 = vmul.f32 %v1091, %v1091
    %v1108 = vmul.f32 %v1092, %v1092
    %v1109 = vmul.f32 %v1093, %v1093
    %v1110 = vmul.f32 %v1094, %v1094
    %v1111 = vmul.f32 %v1095, %v1095
    %v1112 = vmul.f32 %v1096, %v1096
    %v1113 = vmul.f32 %v1097, %v1097
    %v1114 = vmul.f32 %v1098, %v1098
    %v1115 = vmul.f32 %v1099, %v1099
    %v1116 = vadd.f32 %v1003, %v1100
    %v1117 = vadd.f32 %v1004, %v1101
    %v1118 = vadd.f32 %v1005, %v1102
    %v1119 = vadd.f32 %v1006, %v1103
    %v1120 = vadd.f32 %v1007, %v1104
    %v1121 = vadd.f32 %v1008, %v1105
    %v1122 = vadd.f32 %v1009, %v1106
    %v1123 = vadd.f32 %v1010, %v1107
    %v1124 = vadd.f32 %v1011, %v1108
    %v1125 = vadd.f32 %v1012, %v1109
    %v1126 = vadd.f32 %v1013, %v1110
    %v1127 = vadd.f32 %v1014, %v1111
    %v1128 = vadd.f32 %v1015, %v1112
    %v1129 = vadd.f32 %v1016, %v1113
    %v1130 = vadd.f32 %v1017, %v1114
    %v1131 = vadd.f32 %v1018, %v1115
    %vm1132 = vcmp.lt.f32.partialorder %v1116, 0.0256
    %vm1133 = vcmp.lt.f32.partialorder %v1117, 0.0256
    %vm1134 = vcmp.lt.f32.partialorder %v1118, 0.0256
    %vm1135 = vcmp.lt.f32.partialorder %v1119, 0.0256
    %vm1136 = vcmp.lt.f32.partialorder %v1120, 0.0256
    %vm1137 = vcmp.lt.f32.partialorder %v1121, 0.0256
    %vm1138 = vcmp.lt.f32.partialorder %v1122, 0.0256
    %vm1139 = vcmp.lt.f32.partialorder %v1123, 0.0256
    %vm1140 = vcmp.lt.f32.partialorder %v1124, 0.0256
    %vm1141 = vcmp.lt.f32.partialorder %v1125, 0.0256
    %vm1142 = vcmp.lt.f32.partialorder %v1126, 0.0256
    %vm1143 = vcmp.lt.f32.partialorder %v1127, 0.0256
    %vm1144 = vcmp.lt.f32.partialorder %v1128, 0.0256
    %vm1145 = vcmp.lt.f32.partialorder %v1129, 0.0256
    %vm1146 = vcmp.lt.f32.partialorder %v1130, 0.0256
    %vm1147 = vcmp.lt.f32.partialorder %v1131, 0.0256
    %vm1148 = vmand %vm34, %vm1132
    %vm1149 = vmand %vm35, %vm1133
    %vm1150 = vmand %vm36, %vm1134
    %vm1151 = vmand %vm37, %vm1135
    %vm1152 = vmand %vm38, %vm1136
    %vm1153 = vmand %vm39, %vm1137
    %vm1154 = vmand %vm40, %vm1138
    %vm1155 = vmand %vm41, %vm1139
    %vm1156 = vmand %vm42, %vm1140
    %vm1157 = vmand %vm43, %vm1141
    %vm1158 = vmand %vm44, %vm1142
    %vm1159 = vmand %vm45, %vm1143
    %vm1160 = vmand %vm46, %vm1144
    %vm1161 = vmand %vm47, %vm1145
    %vm1162 = vmand %vm48, %vm1146
    %vm1163 = vmand %vm49, %vm1147
    %v1164 = vrsqrt.pop %v1116
    %v1165 = vmul.f32 %v1164, %v1116
    %v1166 = vmul.f32 %v1165, %v1164
    %v1167 = vmul.f32 0.5, %v1166
    %v1168 = vsub.f32 1.5, %v1167
    %v1169 = vmul.f32 %v1164, %v1168
    %v1170 = vmul.f32 %v1116, %v1169
    %vm1171 = vcmp.eq.f32.partialorder %v1116, inf
    %v1172 = vsel %vm1171, %v1116, %v1170
    %vm1173 = vcmp.eq.f32.partialorder %v1116, 0.0
    %v1174 = vand.u32 %v1116, 2147483648
    %v1175 = vsel %vm1173, %v1174, %v1172
    %v1176 = vrsqrt.pop %v1117
    %v1177 = vmul.f32 %v1176, %v1117
    %v1178 = vmul.f32 %v1177, %v1176
    %v1179 = vmul.f32 0.5, %v1178
    %v1180 = vsub.f32 1.5, %v1179
    %v1181 = vmul.f32 %v1176, %v1180
    %v1182 = vmul.f32 %v1117, %v1181
    %vm1183 = vcmp.eq.f32.partialorder %v1117, inf
    %v1184 = vsel %vm1183, %v1117, %v1182
    %vm1185 = vcmp.eq.f32.partialorder %v1117, 0.0
    %v1186 = vand.u32 %v1117, 2147483648
    %v1187 = vsel %vm1185, %v1186, %v1184
    %v1188 = vrsqrt.pop %v1118
    %v1189 = vmul.f32 %v1188, %v1118
    %v1190 = vmul.f32 %v1189, %v1188
    %v1191 = vmul.f32 0.5, %v1190
    %v1192 = vsub.f32 1.5, %v1191
    %v1193 = vmul.f32 %v1188, %v1192
    %v1194 = vmul.f32 %v1118, %v1193
    %vm1195 = vcmp.eq.f32.partialorder %v1118, inf
    %v1196 = vsel %vm1195, %v1118, %v1194
    %vm1197 = vcmp.eq.f32.partialorder %v1118, 0.0
    %v1198 = vand.u32 %v1118, 2147483648
    %v1199 = vsel %vm1197, %v1198, %v1196
    %v1200 = vrsqrt.pop %v1119
    %v1201 = vmul.f32 %v1200, %v1119
    %v1202 = vmul.f32 %v1201, %v1200
    %v1203 = vmul.f32 0.5, %v1202
    %v1204 = vsub.f32 1.5, %v1203
    %v1205 = vmul.f32 %v1200, %v1204
    %v1206 = vmul.f32 %v1119, %v1205
    %vm1207 = vcmp.eq.f32.partialorder %v1119, inf
    %v1208 = vsel %vm1207, %v1119, %v1206
    %vm1209 = vcmp.eq.f32.partialorder %v1119, 0.0
    %v1210 = vand.u32 %v1119, 2147483648
    %v1211 = vsel %vm1209, %v1210, %v1208
    %v1212 = vrsqrt.pop %v1120
    %v1213 = vmul.f32 %v1212, %v1120
    %v1214 = vmul.f32 %v1213, %v1212
    %v1215 = vmul.f32 0.5, %v1214
    %v1216 = vsub.f32 1.5, %v1215
    %v1217 = vmul.f32 %v1212, %v1216
    %v1218 = vmul.f32 %v1120, %v1217
    %vm1219 = vcmp.eq.f32.partialorder %v1120, inf
    %v1220 = vsel %vm1219, %v1120, %v1218
    %vm1221 = vcmp.eq.f32.partialorder %v1120, 0.0
    %v1222 = vand.u32 %v1120, 2147483648
    %v1223 = vsel %vm1221, %v1222, %v1220
    %v1224 = vrsqrt.pop %v1121
    %v1225 = vmul.f32 %v1224, %v1121
    %v1226 = vmul.f32 %v1225, %v1224
    %v1227 = vmul.f32 0.5, %v1226
    %v1228 = vsub.f32 1.5, %v1227
    %v1229 = vmul.f32 %v1224, %v1228
    %v1230 = vmul.f32 %v1121, %v1229
    %vm1231 = vcmp.eq.f32.partialorder %v1121, inf
    %v1232 = vsel %vm1231, %v1121, %v1230
    %vm1233 = vcmp.eq.f32.partialorder %v1121, 0.0
    %v1234 = vand.u32 %v1121, 2147483648
    %v1235 = vsel %vm1233, %v1234, %v1232
    %v1236 = vrsqrt.pop %v1122
    %v1237 = vmul.f32 %v1236, %v1122
    %v1238 = vmul.f32 %v1237, %v1236
    %v1239 = vmul.f32 0.5, %v1238
    %v1240 = vsub.f32 1.5, %v1239
    %v1241 = vmul.f32 %v1236, %v1240
    %v1242 = vmul.f32 %v1122, %v1241
    %vm1243 = vcmp.eq.f32.partialorder %v1122, inf
    %v1244 = vsel %vm1243, %v1122, %v1242
    %vm1245 = vcmp.eq.f32.partialorder %v1122, 0.0
    %v1246 = vand.u32 %v1122, 2147483648
    %v1247 = vsel %vm1245, %v1246, %v1244
    %v1248 = vrsqrt.pop %v1123
    %v1249 = vmul.f32 %v1248, %v1123
    %v1250 = vmul.f32 %v1249, %v1248
    %v1251 = vmul.f32 0.5, %v1250
    %v1252 = vsub.f32 1.5, %v1251
    %v1253 = vmul.f32 %v1248, %v1252
    %v1254 = vmul.f32 %v1123, %v1253
    %vm1255 = vcmp.eq.f32.partialorder %v1123, inf
    %v1256 = vsel %vm1255, %v1123, %v1254
    %vm1257 = vcmp.eq.f32.partialorder %v1123, 0.0
    %v1258 = vand.u32 %v1123, 2147483648
    %v1259 = vsel %vm1257, %v1258, %v1256
    %v1260 = vrsqrt.pop %v1124
    %v1261 = vmul.f32 %v1260, %v1124
    %v1262 = vmul.f32 %v1261, %v1260
    %v1263 = vmul.f32 0.5, %v1262
    %v1264 = vsub.f32 1.5, %v1263
    %v1265 = vmul.f32 %v1260, %v1264
    %v1266 = vmul.f32 %v1124, %v1265
    %vm1267 = vcmp.eq.f32.partialorder %v1124, inf
    %v1268 = vsel %vm1267, %v1124, %v1266
    %vm1269 = vcmp.eq.f32.partialorder %v1124, 0.0
    %v1270 = vand.u32 %v1124, 2147483648
    %v1271 = vsel %vm1269, %v1270, %v1268
    %v1272 = vrsqrt.pop %v1125
    %v1273 = vmul.f32 %v1272, %v1125
    %v1274 = vmul.f32 %v1273, %v1272
    %v1275 = vmul.f32 0.5, %v1274
    %v1276 = vsub.f32 1.5, %v1275
    %v1277 = vmul.f32 %v1272, %v1276
    %v1278 = vmul.f32 %v1125, %v1277
    %vm1279 = vcmp.eq.f32.partialorder %v1125, inf
    %v1280 = vsel %vm1279, %v1125, %v1278
    %vm1281 = vcmp.eq.f32.partialorder %v1125, 0.0
    %v1282 = vand.u32 %v1125, 2147483648
    %v1283 = vsel %vm1281, %v1282, %v1280
    %v1284 = vrsqrt.pop %v1126
    %v1285 = vmul.f32 %v1284, %v1126
    %v1286 = vmul.f32 %v1285, %v1284
    %v1287 = vmul.f32 0.5, %v1286
    %v1288 = vsub.f32 1.5, %v1287
    %v1289 = vmul.f32 %v1284, %v1288
    %v1290 = vmul.f32 %v1126, %v1289
    %vm1291 = vcmp.eq.f32.partialorder %v1126, inf
    %v1292 = vsel %vm1291, %v1126, %v1290
    %vm1293 = vcmp.eq.f32.partialorder %v1126, 0.0
    %v1294 = vand.u32 %v1126, 2147483648
    %v1295 = vsel %vm1293, %v1294, %v1292
    %v1296 = vrsqrt.pop %v1127
    %v1297 = vmul.f32 %v1296, %v1127
    %v1298 = vmul.f32 %v1297, %v1296
    %v1299 = vmul.f32 0.5, %v1298
    %v1300 = vsub.f32 1.5, %v1299
    %v1301 = vmul.f32 %v1296, %v1300
    %v1302 = vmul.f32 %v1127, %v1301
    %vm1303 = vcmp.eq.f32.partialorder %v1127, inf
    %v1304 = vsel %vm1303, %v1127, %v1302
    %vm1305 = vcmp.eq.f32.partialorder %v1127, 0.0
    %v1306 = vand.u32 %v1127, 2147483648
    %v1307 = vsel %vm1305, %v1306, %v1304
    %v1308 = vrsqrt.pop %v1128
    %v1309 = vmul.f32 %v1308, %v1128
    %v1310 = vmul.f32 %v1309, %v1308
    %v1311 = vmul.f32 0.5, %v1310
    %v1312 = vsub.f32 1.5, %v1311
    %v1313 = vmul.f32 %v1308, %v1312
    %v1314 = vmul.f32 %v1128, %v1313
    %vm1315 = vcmp.eq.f32.partialorder %v1128, inf
    %v1316 = vsel %vm1315, %v1128, %v1314
    %vm1317 = vcmp.eq.f32.partialorder %v1128, 0.0
    %v1318 = vand.u32 %v1128, 2147483648
    %v1319 = vsel %vm1317, %v1318, %v1316
    %v1320 = vrsqrt.pop %v1129
    %v1321 = vmul.f32 %v1320, %v1129
    %v1322 = vmul.f32 %v1321, %v1320
    %v1323 = vmul.f32 0.5, %v1322
    %v1324 = vsub.f32 1.5, %v1323
    %v1325 = vmul.f32 %v1320, %v1324
    %v1326 = vmul.f32 %v1129, %v1325
    %vm1327 = vcmp.eq.f32.partialorder %v1129, inf
    %v1328 = vsel %vm1327, %v1129, %v1326
    %vm1329 = vcmp.eq.f32.partialorder %v1129, 0.0
    %v1330 = vand.u32 %v1129, 2147483648
    %v1331 = vsel %vm1329, %v1330, %v1328
    %v1332 = vrsqrt.pop %v1130
    %v1333 = vmul.f32 %v1332, %v1130
    %v1334 = vmul.f32 %v1333, %v1332
    %v1335 = vmul.f32 0.5, %v1334
    %v1336 = vsub.f32 1.5, %v1335
    %v1337 = vmul.f32 %v1332, %v1336
    %v1338 = vmul.f32 %v1130, %v1337
    %vm1339 = vcmp.eq.f32.partialorder %v1130, inf
    %v1340 = vsel %vm1339, %v1130, %v1338
    %vm1341 = vcmp.eq.f32.partialorder %v1130, 0.0
    %v1342 = vand.u32 %v1130, 2147483648
    %v1343 = vsel %vm1341, %v1342, %v1340
    %v1344 = vrsqrt.pop %v1131
    %v1345 = vmul.f32 %v1344, %v1131
    %v1346 = vmul.f32 %v1345, %v1344
    %v1347 = vmul.f32 0.5, %v1346
    %v1348 = vsub.f32 1.5, %v1347
    %v1349 = vmul.f32 %v1344, %v1348
    %v1350 = vmul.f32 %v1131, %v1349
    %vm1351 = vcmp.eq.f32.partialorder %v1131, inf
    %v1352 = vsel %vm1351, %v1131, %v1350
    %vm1353 = vcmp.eq.f32.partialorder %v1131, 0.0
    %v1354 = vand.u32 %v1131, 2147483648
    %v1355 = vsel %vm1353, %v1354, %v1352
    %v1356 = vsub.f32 0.16, %v1175
    %v1357 = vsub.f32 0.16, %v1187
    %v1358 = vsub.f32 0.16, %v1199
    %v1359 = vsub.f32 0.16, %v1211
    %v1360 = vsub.f32 0.16, %v1223
    %v1361 = vsub.f32 0.16, %v1235
    %v1362 = vsub.f32 0.16, %v1247
    %v1363 = vsub.f32 0.16, %v1259
    %v1364 = vsub.f32 0.16, %v1271
    %v1365 = vsub.f32 0.16, %v1283
    %v1366 = vsub.f32 0.16, %v1295
    %v1367 = vsub.f32 0.16, %v1307
    %v1368 = vsub.f32 0.16, %v1319
    %v1369 = vsub.f32 0.16, %v1331
    %v1370 = vsub.f32 0.16, %v1343
    %v1371 = vsub.f32 0.16, %v1355
    %v1372 = vsel %vm1148, %v1356, 0.0
    %v1373 = vsel %vm1149, %v1357, 0.0
    %v1374 = vsel %vm1150, %v1358, 0.0
    %v1375 = vsel %vm1151, %v1359, 0.0
    %v1376 = vsel %vm1152, %v1360, 0.0
    %v1377 = vsel %vm1153, %v1361, 0.0
    %v1378 = vsel %vm1154, %v1362, 0.0
    %v1379 = vsel %vm1155, %v1363, 0.0
    %v1380 = vsel %vm1156, %v1364, 0.0
    %v1381 = vsel %vm1157, %v1365, 0.0
    %v1382 = vsel %vm1158, %v1366, 0.0
    %v1383 = vsel %vm1159, %v1367, 0.0
    %v1384 = vsel %vm1160, %v1368, 0.0
    %v1385 = vsel %vm1161, %v1369, 0.0
    %v1386 = vsel %vm1162, %v1370, 0.0
    %v1387 = vsel %vm1163, %v1371, 0.0
    %v1388 = vsel %vm1148, 1, 0
    %v1389 = vsel %vm1149, 1, 0
    %v1390 = vsel %vm1150, 1, 0
    %v1391 = vsel %vm1151, 1, 0
    %v1392 = vsel %vm1152, 1, 0
    %v1393 = vsel %vm1153, 1, 0
    %v1394 = vsel %vm1154, 1, 0
    %v1395 = vsel %vm1155, 1, 0
    %v1396 = vsel %vm1156, 1, 0
    %v1397 = vsel %vm1157, 1, 0
    %v1398 = vsel %vm1158, 1, 0
    %v1399 = vsel %vm1159, 1, 0
    %v1400 = vsel %vm1160, 1, 0
    %v1401 = vsel %vm1161, 1, 0
    %v1402 = vsel %vm1162, 1, 0
    %v1403 = vsel %vm1163, 1, 0
    %v1404 = vcvt.s32.f32 %v1388
    %v1405 = vcvt.s32.f32 %v1389
    %v1406 = vcvt.s32.f32 %v1390
    %v1407 = vcvt.s32.f32 %v1391
    %v1408 = vcvt.s32.f32 %v1392
    %v1409 = vcvt.s32.f32 %v1393
    %v1410 = vcvt.s32.f32 %v1394
    %v1411 = vcvt.s32.f32 %v1395
    %v1412 = vcvt.s32.f32 %v1396
    %v1413 = vcvt.s32.f32 %v1397
    %v1414 = vcvt.s32.f32 %v1398
    %v1415 = vcvt.s32.f32 %v1399
    %v1416 = vcvt.s32.f32 %v1400
    %v1417 = vcvt.s32.f32 %v1401
    %v1418 = vcvt.s32.f32 %v1402
    %v1419 = vcvt.s32.f32 %v1403
    %v1420 = vadd.f32 %v1404, %v1405
    %v1421 = vadd.f32 %v1420, %v1406
    %v1422 = vadd.f32 %v1421, %v1407
    %v1423 = vadd.f32 %v1422, %v1408
    %v1424 = vadd.f32 %v1423, %v1409
    %v1425 = vadd.f32 %v1424, %v1410
    %v1426 = vadd.f32 %v1425, %v1411
    %v1427 = vadd.f32 %v1426, %v1412
    %v1428 = vadd.f32 %v1427, %v1413
    %v1429 = vadd.f32 %v1428, %v1414
    %v1430 = vadd.f32 %v1429, %v1415
    %v1431 = vadd.f32 %v1430, %v1416
    %v1432 = vadd.f32 %v1431, %v1417
    %v1433 = vadd.f32 %v1432, %v1418
    %v1434 = vadd.f32 %v1433, %v1419
    %v1435 = vadd.f32 %v725, %v1434
    %v1436 = vmul.f32 %v1372, %v1372
    %v1437 = vmul.f32 %v1373, %v1373
    %v1438 = vmul.f32 %v1374, %v1374
    %v1439 = vmul.f32 %v1375, %v1375
    %v1440 = vmul.f32 %v1376, %v1376
    %v1441 = vmul.f32 %v1377, %v1377
    %v1442 = vmul.f32 %v1378, %v1378
    %v1443 = vmul.f32 %v1379, %v1379
    %v1444 = vmul.f32 %v1380, %v1380
    %v1445 = vmul.f32 %v1381, %v1381
    %v1446 = vmul.f32 %v1382, %v1382
    %v1447 = vmul.f32 %v1383, %v1383
    %v1448 = vmul.f32 %v1384, %v1384
    %v1449 = vmul.f32 %v1385, %v1385
    %v1450 = vmul.f32 %v1386, %v1386
    %v1451 = vmul.f32 %v1387, %v1387
    %v1452 = vadd.f32 %v1436, %v1437
    %v1453 = vadd.f32 %v1452, %v1438
    %v1454 = vadd.f32 %v1453, %v1439
    %v1455 = vadd.f32 %v1454, %v1440
    %v1456 = vadd.f32 %v1455, %v1441
    %v1457 = vadd.f32 %v1456, %v1442
    %v1458 = vadd.f32 %v1457, %v1443
    %v1459 = vadd.f32 %v1458, %v1444
    %v1460 = vadd.f32 %v1459, %v1445
    %v1461 = vadd.f32 %v1460, %v1446
    %v1462 = vadd.f32 %v1461, %v1447
    %v1463 = vadd.f32 %v1462, %v1448
    %v1464 = vadd.f32 %v1463, %v1449
    %v1465 = vadd.f32 %v1464, %v1450
    %v1466 = vadd.f32 %v1465, %v1451
    %v1467 = vadd.f32 %v757, %v1466
    %1468 = vst [vmem:[#allocation2] sm:$0xff] %v1435
    %1469 = vst [vmem:[#allocation4] sm:$0xff] %v1467
    // Predicated region
    $region10: #{tpu_custom_call.1} parent=1 // pred_check
      _
    $region11: #{tpu_custom_call.1} parent=1 // pred_check_branch
      %1471 = sbr.rel (0) target = $region13
    $region12: #{tpu_custom_call.1} parent=1 // pred_region
      %1473 = vsyncadd [#allocation3], 0
      %s1475 = sshll.u32 [#allocation2], 4
      %s1476 = int_to_ptr.vmem [resolvable:$true] %s1475
      %s1477 = sshll.u32 %s2, 4
      %s1478 = int_to_ptr.hbm [resolvable:$true] %s1477
      %1480 = dma.vmem_to_hbm [thread:$0]  %s1476, 128, %s1478, [#allocation3]
    $region13: #{tpu_custom_call.1} parent=1 // pred_fallthru
      _
    // Predicated region
    $region14: #{tpu_custom_call.1} parent=1 // pred_check
      _
    $region15: #{tpu_custom_call.1} parent=1 // pred_check_branch
      %1482 = sbr.rel (0) target = $region17
    $region16: #{tpu_custom_call.1} parent=1 // pred_region
      %1484 = vsyncadd [#allocation5], 0
      %s1486 = sshll.u32 [#allocation4], 4
      %s1487 = int_to_ptr.vmem [resolvable:$true] %s1486
      %s1488 = sshll.u32 %s3, 4
      %s1489 = int_to_ptr.hbm [resolvable:$true] %s1488
      %1491 = dma.vmem_to_hbm [thread:$0]  %s1487, 128, %s1489, [#allocation5]
    $region17: #{tpu_custom_call.1} parent=1 // pred_fallthru
      _
    // Predicated region
    $region18: #{tpu_custom_call.1} parent=1 // pred_check
      _
    $region19: #{tpu_custom_call.1} parent=1 // pred_check_branch
      %1493 = sbr.rel (0) target = $region21
    $region20: #{tpu_custom_call.1} parent=1 // pred_region
      %1495 = dma.done [#allocation3], 128
    $region21: #{tpu_custom_call.1} parent=1 // pred_fallthru
      _
    // Predicated region
    $region22: #{tpu_custom_call.1} parent=1 // pred_check
      _
    $region23: #{tpu_custom_call.1} parent=1 // pred_check_branch
      %1497 = sbr.rel (0) target = $region25
    $region24: #{tpu_custom_call.1} parent=1 // pred_region
      %1499 = dma.done [#allocation5], 128
    $region25: #{tpu_custom_call.1} parent=1 // pred_fallthru
      _
    %1500 = vsyncpa [#allocation3], 1
    %1501 = vsyncpa [#allocation5], 1

</llo_original>
